<compile_context>
chip_gen: v7x
topology: tpu7x:2x2x1
jax: 0.10.0
libtpu: 0.0.40
codegen_flags: <defaults>
</compile_context>

<pallas_src>
import functools

import numpy as np
import jax
import jax.numpy as jnp
from jax.experimental import pallas as pl
from jax.experimental.pallas import tpu as pltpu


def _conv_bn_relu_kernel(x_ref, w_ref, b_ref, o_ref, *, NB, H, Kd, Nd):
    """Fused Conv3x3(pad=1, no bias) + folded BN + ReLU, single MXU dot.

    x_ref : (NB, H, Kd)  bf16  stacked shifted row views, Kd = 3*W*C_in
    w_ref : (Kd, Nd)     bf16  Toeplitz weights with BN scale folded in
    b_ref : (1, Nd)      f32   folded BN bias, tiled over W
    o_ref : (NB, H, Nd)  f32   lane-dense output (Nd = W*C_out)
    """
    lhs = x_ref[...].reshape(NB * H, Kd)          # contiguous merge of leading dims
    acc = jnp.dot(lhs, w_ref[...], preferred_element_type=jnp.float32)  # one MXU dot
    y = jnp.maximum(acc + b_ref[...], 0.0)        # bias + ReLU on full-lane vregs
    o_ref[...] = y.reshape(NB, H, Nd).astype(o_ref.dtype)


def prepare_conv_bn_params(w, gamma, beta, rmean, rvar, W, eps=1e-5):
    """Build (once, at parameter-prep time, in numpy) the Toeplitz weight with
    BN scale folded in, and the tiled BN bias.  Cache the result per layer."""
    w = np.asarray(w, np.float32)                 # (C_out, C_in, 3, 3) OIHW
    gamma = np.asarray(gamma, np.float32)
    beta = np.asarray(beta, np.float32)
    rmean = np.asarray(rmean, np.float32)
    rvar = np.asarray(rvar, np.float32)
    C_out, C_in, _, _ = w.shape

    scale = gamma / np.sqrt(rvar + eps)           # (C_out,)
    bias = beta - rmean * scale                   # (C_out,)

    # sel[dx, u, x] = 1 if u == x + dx - 1 and 0 <= u < W  (horizontal zero-pad
    # folded into structural zeros of the Toeplitz weight).
    sel = np.zeros((3, W, W), np.float32)
    for dx in range(3):
        for xo in range(W):
            u = xo + dx - 1
            if 0 <= u < W:
                sel[dx, u, xo] = 1.0

    w_hwio = np.transpose(w, (2, 3, 1, 0))        # (dy, dx, C_in, C_out)
    # w_stk[dy, u, c, x, o] = sum_dx sel[dx,u,x] * w[o,c,dy,dx] * scale[o]
    w_stk = np.einsum('dux,ydco->yucxo', sel, w_hwio)
    w_stk = w_stk * scale[None, None, None, None, :]
    w_stk = w_stk.reshape(3 * W * C_in, W * C_out)

    bias_t = np.tile(bias, W).reshape(1, W * C_out)

    return (jnp.asarray(w_stk, jnp.bfloat16), jnp.asarray(bias_t, jnp.float32))


def _choose_batch_block(N, H):
    # Target >= 256 matmul rows per grid step (fills the 256-deep MXU on
    # v6e/v7x) while keeping >= 2 grid steps so both v7x TensorCores get work
    # and the BlockSpec pipeline can overlap DMA with compute.
    nb = max(1, min(N, 256 // max(H, 1)))
    while nb > 1 and pl.cdiv(N, nb) < 2:
        nb = max(1, nb // 2)
    return nb


def conv_block_single_pallas(x_nchw, folded_params, *, batch_block=None):
    """x_nchw: (N, C_in, H, W) float32. Returns (N, C_out, H, W) float32."""
    w_stk, bias_t = folded_params
    N, C_in, H, W = x_nchw.shape
    Kd, Nd = w_stk.shape
    C_out = Nd // W
    assert Kd == 3 * W * C_in

    NB = _choose_batch_block(N, H) if batch_block is None else batch_block
    grid = (pl.cdiv(N, NB),)

    # NCHW -> NHWC, 1-row vertical halo only (horizontal halo lives as zero taps
    # in the Toeplitz weight), then stack the 3 vertically shifted views along
    # the lane dim so the kernel does a single K = 3*W*C_in matmul with no
    # in-kernel slice/copy.  bf16 cast halves the input DMA bytes.
    x = jnp.transpose(x_nchw, (0, 2, 3, 1)).astype(jnp.float32)
    xp = jnp.pad(x, ((0, 0), (1, 1), (0, 0), (0, 0)))            # (N, H+2, W, C_in)
    x_stk = jnp.stack([xp[:, 0:H], xp[:, 1:H + 1], xp[:, 2:H + 2]], axis=2)
    x_stk = x_stk.reshape(N, H, Kd).astype(jnp.bfloat16)

    kernel = functools.partial(_conv_bn_relu_kernel, NB=NB, H=H, Kd=Kd, Nd=Nd)

    # Explicit VMEM budget: double-buffered input/output blocks + resident
    # weights/bias + headroom.  Stays inside v5e's 16 MiB default scoped VMEM
    # at these shapes and well inside v7x's 64 MiB physical.
    in_blk = NB * H * Kd * 2
    out_blk = NB * H * Nd * 4
    w_bytes = Kd * Nd * 2 + Nd * 4
    vmem_limit = int(min(max(2 * (in_blk + out_blk + w_bytes) + (1 << 20), 4 << 20),
                         48 << 20))

    cost = pl.CostEstimate(
        flops=2 * N * H * Kd * Nd,
        transcendentals=0,
        bytes_accessed=int(N * H * Kd * 2 + Kd * Nd * 2 + Nd * 4 + N * H * Nd * 4),
    )

    out = pl.pallas_call(
        kernel,
        out_shape=jax.ShapeDtypeStruct((N, H, Nd), jnp.float32),
        grid_spec=pltpu.PrefetchScalarGridSpec(
            num_scalar_prefetch=0,
            grid=grid,
            in_specs=[
                pl.BlockSpec((NB, H, Kd), lambda n: (n, 0, 0)),
                pl.BlockSpec((Kd, Nd), lambda n: (0, 0)),
                pl.BlockSpec((1, Nd), lambda n: (0, 0)),
            ],
            out_specs=pl.BlockSpec((NB, H, Nd), lambda n: (n, 0, 0)),
        ),
        compiler_params=pltpu.CompilerParams(
            dimension_semantics=("parallel",),
            vmem_limit_bytes=vmem_limit),
        cost_estimate=cost,
    )(x_stk, w_stk, bias_t)

    # (N, H, W*C_out) -> (N, C_out, H, W) to match PyTorch NCHW convention.
    return jnp.transpose(out.reshape(N, H, W, C_out), (0, 3, 1, 2))


def make_params(key, ch_in, ch_out):
    """Deterministic parameters matching conv_block_single.__init__ shapes."""
    k1, k2 = jax.random.split(key, 2)
    w = jax.random.normal(k1, (ch_out, ch_in, 3, 3), jnp.float32) * 0.1   # OIHW, no bias
    gamma = 1.0 + 0.05 * jax.random.normal(k2, (ch_out,), jnp.float32)
    beta = 0.02 * jnp.arange(ch_out, dtype=jnp.float32)
    rmean = 0.01 * jnp.arange(ch_out, dtype=jnp.float32)
    rvar = jnp.ones((ch_out,), jnp.float32) * 0.9
    return (w, gamma, beta, rmean, rvar)


def conv_block_single_ref(x_nchw, params):
    """Pure-JAX f32 reference (same math) for a correctness sanity check."""
    w, gamma, beta, rmean, rvar = params
    eps = 1e-5
    y = jax.lax.conv_general_dilated(
        x_nchw, w, window_strides=(1, 1), padding=((1, 1), (1, 1)),
        dimension_numbers=("NCHW", "OIHW", "NCHW"))
    scale = (gamma / jnp.sqrt(rvar + eps)).reshape(1, -1, 1, 1)
    bias = (beta - rmean * gamma / jnp.sqrt(rvar + eps)).reshape(1, -1, 1, 1)
    return jnp.maximum(y * scale + bias, 0.0)


if __name__ == "__main__":
    key = jax.random.PRNGKey(0)
    k_x, k_p = jax.random.split(key)

    N, C_IN, C_OUT, H, W = 2, 4, 8, 16, 16   # W*C_OUT = 128 -> lane-dense output
    x = jax.random.normal(k_x, (N, C_IN, H, W), jnp.float32)
    params = make_params(k_p, C_IN, C_OUT)

    # Parameter prep (Toeplitz + BN fold + bf16 cast) done once, outside the call.
    folded = prepare_conv_bn_params(*params, W=W)

    out = conv_block_single_pallas(x, folded)
    out = jax.block_until_ready(out)

    ref = jax.block_until_ready(conv_block_single_ref(x, params))
    assert out.shape == (N, C_OUT, H, W), out.shape
    err = float(jnp.max(jnp.abs(out - ref)))
    # bf16 MXU inputs with f32 accumulation -> small, bounded drift vs f32 ref.
    assert err < 3e-2, err

    print("KERNEL_OK")
</pallas_src>

<mosaic_0001>
module attributes {stable_mosaic.version = 11 : i64} {
  func.func @_conv_bn_relu_kernel(%arg0: i32, %arg1: memref<1x16x192xbf16, #tpu.memory_space<vmem>>, %arg2: memref<192x128xbf16, #tpu.memory_space<vmem>>, %arg3: memref<1x128xf32, #tpu.memory_space<vmem>>, %arg4: memref<1x16x128xf32, #tpu.memory_space<vmem>>) attributes {dimension_semantics = [#tpu.dimension_semantics<parallel>], iteration_bounds = array<i64: 2>, scalar_prefetch = 0 : i64, scratch_operands = 0 : i64, tpu.core_type = #tpu.core_type<tc>, window_params = [{transform_indices = @transform_0, window_bounds = array<i64: 1, 16, 192>}, {pipeline_mode = #tpu.pipeline_mode<synchronous>, transform_indices = @transform_1, window_bounds = array<i64: 192, 128>}, {pipeline_mode = #tpu.pipeline_mode<synchronous>, transform_indices = @transform_2, window_bounds = array<i64: 1, 128>}, {transform_indices = @transform_3, window_bounds = array<i64: 1, 16, 128>}]} {
    %c0 = arith.constant 0 : index
    %c0_0 = arith.constant 0 : index
    %c0_1 = arith.constant 0 : index
    %0 = vector.load %arg1[%c0, %c0_0, %c0_1] : memref<1x16x192xbf16, #tpu.memory_space<vmem>>, vector<1x16x192xbf16>
    %1 = vector.shape_cast %0 : vector<1x16x192xbf16> to vector<16x192xbf16>
    %c0_2 = arith.constant 0 : index
    %c0_3 = arith.constant 0 : index
    %2 = vector.load %arg2[%c0_2, %c0_3] : memref<192x128xbf16, #tpu.memory_space<vmem>>, vector<192x128xbf16>
    %cst = arith.constant dense<0.000000e+00> : vector<16x128xf32>
    %3 = tpu.matmul %1, %2, %cst {dimension_numbers = #tpu.dot_dimension_numbers<[1], [0], [0], [1], [0, 0, 1, 1], [], []>} : vector<16x192xbf16>, vector<192x128xbf16>, vector<16x128xf32> -> vector<16x128xf32>
    %c0_4 = arith.constant 0 : index
    %c0_5 = arith.constant 0 : index
    %4 = vector.load %arg3[%c0_4, %c0_5] : memref<1x128xf32, #tpu.memory_space<vmem>>, vector<1x128xf32>
    %5 = vector.broadcast %4 : vector<1x128xf32> to vector<16x128xf32>
    %6 = arith.addf %3, %5 : vector<16x128xf32>
    %cst_6 = arith.constant 0.000000e+00 : f32
    %7 = vector.broadcast %cst_6 : f32 to vector<16x128xf32>
    %8 = arith.maximumf %6, %7 : vector<16x128xf32>
    %9 = vector.shape_cast %8 : vector<16x128xf32> to vector<1x16x128xf32>
    %c0_7 = arith.constant 0 : index
    %c0_8 = arith.constant 0 : index
    %c0_9 = arith.constant 0 : index
    %10 = vector.load %arg4[%c0_7, %c0_8, %c0_9] : memref<1x16x128xf32, #tpu.memory_space<vmem>>, vector<1x16x128xf32>
    tpu.vector_store %arg4[%c0_7, %c0_8, %c0_9], %9 {strides = array<i32>} : memref<1x16x128xf32, #tpu.memory_space<vmem>>, vector<1x16x128xf32>,
    return
  }
  func.func @transform_0(%arg0: i32) -> (i32, i32, i32) {
    %c0_i32 = arith.constant 0 : i32
    %c0_i32_0 = arith.constant 0 : i32
    %c0_i32_1 = arith.constant 0 : i32
    return %arg0, %c0_i32, %c0_i32_0 : i32, i32, i32
  }
  func.func @transform_1(%arg0: i32) -> (i32, i32) {
    %c0_i32 = arith.constant 0 : i32
    %c0_i32_0 = arith.constant 0 : i32
    %c0_i32_1 = arith.constant 0 : i32
    return %c0_i32, %c0_i32_0 : i32, i32
  }
  func.func @transform_2(%arg0: i32) -> (i32, i32) {
    %c0_i32 = arith.constant 0 : i32
    %c0_i32_0 = arith.constant 0 : i32
    %c0_i32_1 = arith.constant 0 : i32
    return %c0_i32, %c0_i32_0 : i32, i32
  }
  func.func @transform_3(%arg0: i32) -> (i32, i32, i32) {
    %c0_i32 = arith.constant 0 : i32
    %c0_i32_0 = arith.constant 0 : i32
    %c0_i32_1 = arith.constant 0 : i32
    return %arg0, %c0_i32, %c0_i32_0 : i32, i32, i32
  }
}

</mosaic_0001>

<llo_original>
// kernel: tpu_custom_call.1
$region0: #{tpu_custom_call.1}
  #allocation0 [shape = 'u32[]', space=smem, size = 0x4, offset = 0x4, fixed_abs, tag = 'smem constant byte address 0x4 - core index']
  #allocation1 [shape = 'u32[144,128]{1,0:T(1,128)}', space=vmem, size = 0x12000, scoped, tag = 'internal scratch']
  %s0 = inlined_call_operand.hbm [shape: bf16[2,16,192], index: 0, kind: input, shape index: {}]
  %s1 = inlined_call_operand.hbm [shape: bf16[192,128], index: 1, kind: input, shape index: {}]
  %s2 = inlined_call_operand.vmem [shape: f32[1,128], index: 2, kind: input, shape index: {}]
  %s3 = inlined_call_operand.hbm [shape: f32[2,16,128], index: 3, kind: output, shape index: {}]
  %s4 = sld [smem:[#allocation0]]
  $region53: #{tpu_custom_call.1} parent=0
    _
  %s6 = ssub.s32 1, %s4
  %s7 = scalar_select 0, %s6, %s4
  $region1: #{tpu_custom_call.1} parent=0
    #allocation2 [shape = 'u8[16384]{0}', space=vmem, size = 0x4000, scoped, tag = 'input window, operand 0']
    #allocation3 [shape = 's32[2]{0}', space=sflag, size = 0x8, scoped, tag = 'scoped memory for tpu_custom_call.1']
    #allocation4 [shape = 's32[2]{0}', space=sflag, size = 0x8, scoped, tag = 'scoped memory for tpu_custom_call.1']
    #allocation5 [shape = 'u8[49152]{0}', space=vmem, size = 0xc000, scoped, tag = 'input window, operand 1, single buffered']
    #allocation6 [shape = 's32[1]{0}', space=sflag, size = 0x4, scoped, tag = 'scoped memory for tpu_custom_call.1']
    #allocation7 [shape = 'u8[16384]{0}', space=vmem, size = 0x4000, scoped, tag = 'output window, operand 0']
    %8 = vsyncpa [#allocation3], 0
    %s9 = scalar_lea.sflag [#allocation3], 1
    %10 = vsyncpa %s9, 0
    %11 = vsyncpa [#allocation6], 0
    %12 = vsyncpa [#allocation4], 0
    %s13 = scalar_lea.sflag [#allocation4], 1
    %14 = vsyncpa %s13, 0
    loop: start=0, step=1, limit=4
    $region2: #{tpu_custom_call.1} parent=1 // loop_pre_header
      _
    $region3: #{tpu_custom_call.1} parent=1 // loop_header
      %s16 = sphi 0, %s20
      %p17 = scmp.ge.s32.totalorder %s16, 4
      %s26 = sphi 0, %s28
      %s29 = sphi 0, %s26
      %s30 = sphi 0, %s29
      %s46 = sphi 0, %s30
      %s50 = sphi 0, %s50
      %s52 = sphi 0, %s50
      %s53 = sphi 0, %s52
      %s67 = sphi 0, %s53
      %s71 = sphi 0, %s71
      %s73 = sphi 0, %s71
      %s74 = sphi 0, %s73
      %s88 = sphi 0, %s74
      %s94 = sphi 0, %s96
      %s97 = sphi 0, %s94
      %s98 = sphi 0, %s97
      %s114 = sphi 0, %s98
    $region4: #{tpu_custom_call.1} parent=1 // loop_header_branch
      %19 = sbr.rel (%p17) target = $region8
    $region5: #{tpu_custom_call.1} parent=1 // loop_body
      %s21 = ssub.s32 %s16, 1
      %s22 = ssub.s32 %s16, 2
      %s23 = sadd.s32 %s16, 1
      %s24 = ssub.s32 %s16, %s23
      %p25 = scmp.eq.s32.totalorder %s24, 0
      %s27 = sadd.s32 %s26, 1
      %s28 = scalar_select %p25, %s26, %s27
      %p31 = pneg %p25
      %p32 = scmp.eq.s32.totalorder %s16, 1
      %p33 = por %p31, %p32
      %p34 = scmp.ne.s32.totalorder %s26, %s29
      %p35 = scmp.eq.s32.totalorder %s16, 0
      %p36 = por %p34, %p35
      %p37 = scmp.ne.s32.totalorder %s26, %s29
      %p38 = scmp.eq.s32.totalorder %s21, 1
      %p39 = por %p37, %p38
      %p40 = scmp.ne.s32.totalorder %s29, %s30
      %p41 = scmp.eq.s32.totalorder %s21, 0
      %p42 = por %p40, %p41
      %p43 = scmp.ne.s32.totalorder %s29, %s30
      %p44 = scmp.eq.s32.totalorder %s22, 1
      %p45 = por %p43, %p44
      %p47 = scmp.ne.s32.totalorder %s30, %s46
      %p48 = scmp.eq.s32.totalorder %s22, 0
      %p49 = por %p47, %p48
      %s51 = sadd.s32 %s50, 1
      %p54 = scmp.eq.s32.totalorder %s16, 1
      %p55 = scmp.ne.s32.totalorder %s50, %s52
      %p56 = scmp.eq.s32.totalorder %s16, 0
      %p57 = por %p55, %p56
      %p58 = scmp.ne.s32.totalorder %s50, %s52
      %p59 = scmp.eq.s32.totalorder %s21, 1
      %p60 = por %p58, %p59
      %p61 = scmp.ne.s32.totalorder %s52, %s53
      %p62 = scmp.eq.s32.totalorder %s21, 0
      %p63 = por %p61, %p62
      %p64 = scmp.ne.s32.totalorder %s52, %s53
      %p65 = scmp.eq.s32.totalorder %s22, 1
      %p66 = por %p64, %p65
      %p68 = scmp.ne.s32.totalorder %s53, %s67
      %p69 = scmp.eq.s32.totalorder %s22, 0
      %p70 = por %p68, %p69
      %s72 = sadd.s32 %s71, 1
      %p75 = scmp.eq.s32.totalorder %s16, 1
      %p76 = scmp.ne.s32.totalorder %s71, %s73
      %p77 = scmp.eq.s32.totalorder %s16, 0
      %p78 = por %p76, %p77
      %p79 = scmp.ne.s32.totalorder %s71, %s73
      %p80 = scmp.eq.s32.totalorder %s21, 1
      %p81 = por %p79, %p80
      %p82 = scmp.ne.s32.totalorder %s73, %s74
      %p83 = scmp.eq.s32.totalorder %s21, 0
      %p84 = por %p82, %p83
      %p85 = scmp.ne.s32.totalorder %s73, %s74
      %p86 = scmp.eq.s32.totalorder %s22, 1
      %p87 = por %p85, %p86
      %p89 = scmp.ne.s32.totalorder %s74, %s88
      %p90 = scmp.eq.s32.totalorder %s22, 0
      %p91 = por %p89, %p90
      %s92 = ssub.s32 %s16, %s23
      %p93 = scmp.eq.s32.totalorder %s92, 0
      %s95 = sadd.s32 %s94, 1
      %s96 = scalar_select %p93, %s94, %s95
      %p99 = pneg %p93
      %p100 = scmp.eq.s32.totalorder %s16, 1
      %p101 = por %p99, %p100
      %p102 = scmp.ne.s32.totalorder %s94, %s97
      %p103 = scmp.eq.s32.totalorder %s16, 0
      %p104 = por %p102, %p103
      %p105 = scmp.ne.s32.totalorder %s94, %s97
      %p106 = scmp.eq.s32.totalorder %s21, 1
      %p107 = por %p105, %p106
      %p108 = scmp.ne.s32.totalorder %s97, %s98
      %p109 = scmp.eq.s32.totalorder %s21, 0
      %p110 = por %p108, %p109
      %p111 = scmp.ne.s32.totalorder %s97, %s98
      %p112 = scmp.eq.s32.totalorder %s22, 1
      %p113 = por %p111, %p112
      %p115 = scmp.ne.s32.totalorder %s98, %s114
      %p116 = scmp.eq.s32.totalorder %s22, 0
      %p117 = por %p115, %p116
      %p118 = scmp.le.s32.totalorder 1, %s16
      %p119 = scmp.lt.s32.totalorder %s16, 3
      %p120 = pnand %p118, %p119
      %p121 = pneg %p120
      // Predicated region
      $region9: #{tpu_custom_call.1} parent=5 // pred_check
        _
      $region10: #{tpu_custom_call.1} parent=5 // pred_check_branch
        %123 = sbr.rel (%p120) target = $region12
      $region11: #{tpu_custom_call.1} parent=5 // pred_region
        %s124 = ssub.s32 %s16, 1
        // Predicated region
        $region13: #{tpu_custom_call.1} parent=11 // pred_check
          %p125 = pneg %p63
        $region14: #{tpu_custom_call.1} parent=11 // pred_check_branch
          %127 = sbr.rel (%p125) target = $region16
        $region15: #{tpu_custom_call.1} parent=11 // pred_region
          %s129 = ssub.s32 1536, 1536
          %130 = vsyncadd [#allocation6], %s129
          %s131 = sshll.u32 [#allocation5], 4
          %s132 = int_to_ptr.vmem [resolvable:$true] %s131
          %137 = dma.hbm_to_vmem [thread:$0]  %s1, 1536, %s132, [#allocation6], 64, 64, 4
        $region16: #{tpu_custom_call.1} parent=11 // pred_fallthru
          _
        // Predicated region
        $region17: #{tpu_custom_call.1} parent=11 // pred_check
          %p138 = pneg %p84
        $region18: #{tpu_custom_call.1} parent=11 // pred_check_branch
          %140 = sbr.rel (%p138) target = $region20
        $region19: #{tpu_custom_call.1} parent=11 // pred_region
          _
        $region20: #{tpu_custom_call.1} parent=11 // pred_fallthru
          _
      $region12: #{tpu_custom_call.1} parent=5 // pred_fallthru
        _
      %p141 = scmp.lt.s32.totalorder %s16, 2
      // Predicated region
      $region21: #{tpu_custom_call.1} parent=5 // pred_check
        %p142 = pneg %p141
      $region22: #{tpu_custom_call.1} parent=5 // pred_check_branch
        %144 = sbr.rel (%p142) target = $region24
      $region23: #{tpu_custom_call.1} parent=5 // pred_region
        // Predicated region
        $region25: #{tpu_custom_call.1} parent=23 // pred_check
          %p145 = pneg %p36
        $region26: #{tpu_custom_call.1} parent=23 // pred_check_branch
          %147 = sbr.rel (%p145) target = $region28
        $region27: #{tpu_custom_call.1} parent=23 // pred_region
          %s148 = sand.u32 %s26, 1
          %s149 = scalar_lea.sflag [#allocation3], %s148
          %s150 = sand.u32 %s26, 1
          %s151 = smul.addr %s150, 16
          %s152 = scalar_lea.vmem [#allocation2], %s151
          %s154 = ssub.s32 256, 256
          %155 = vsyncadd %s149, %s154
          %s156 = smul.addr %s16, 4
          %s157 = smul.addr %s156, 64
          %s158 = scalar_lea.hbm %s0, %s157
          %s159 = sshll.u32 %s152, 4
          %s160 = int_to_ptr.vmem [resolvable:$true] %s159
          %165 = dma.hbm_to_vmem [thread:$0]  %s158, 256, %s160, %s149, 128, 128, 8
        $region28: #{tpu_custom_call.1} parent=23 // pred_fallthru
          _
      $region24: #{tpu_custom_call.1} parent=5 // pred_fallthru
        _
      %p166 = scmp.le.s32.totalorder 1, %s16
      %p167 = scmp.lt.s32.totalorder %s16, 3
      %p168 = pnand %p166, %p167
      %p169 = pneg %p168
      // Predicated region
      $region29: #{tpu_custom_call.1} parent=5 // pred_check
        _
      $region30: #{tpu_custom_call.1} parent=5 // pred_check_branch
        %171 = sbr.rel (%p168) target = $region32
      $region31: #{tpu_custom_call.1} parent=5 // pred_region
        %s172 = ssub.s32 %s16, 1
        %s173 = sand.u32 %s29, 1
        %s174 = scalar_lea.sflag [#allocation3], %s173
        %s175 = sand.u32 %s29, 1
        %s176 = smul.addr %s175, 16
        %s177 = scalar_lea.vmem [#allocation2], %s176
        // Predicated region
        $region33: #{tpu_custom_call.1} parent=31 // pred_check
          %p178 = pneg %p42
        $region34: #{tpu_custom_call.1} parent=31 // pred_check_branch
          %180 = sbr.rel (%p178) target = $region36
        $region35: #{tpu_custom_call.1} parent=31 // pred_region
          %181 = dma.done %s174, 256
        $region36: #{tpu_custom_call.1} parent=31 // pred_fallthru
          _
        // Predicated region
        $region37: #{tpu_custom_call.1} parent=31 // pred_check
          %p182 = pneg %p63
        $region38: #{tpu_custom_call.1} parent=31 // pred_check_branch
          %184 = sbr.rel (%p182) target = $region40
        $region39: #{tpu_custom_call.1} parent=31 // pred_region
          %185 = dma.done [#allocation6], 1536
        $region40: #{tpu_custom_call.1} parent=31 // pred_fallthru
          _
        %s186 = sand.u32 %s29, 1
        %s187 = scalar_lea.sflag [#allocation3], %s186
        %s188 = sand.u32 %s29, 1
        %s189 = smul.addr %s188, 16
        %s190 = scalar_lea.vmem [#allocation2], %s189
        %p191 = pneg %p42
        %p192 = pneg %p39
        %p193 = pneg %p63
        %p194 = pneg %p60
        %p195 = pneg %p84
        %p196 = pneg %p81
        %p197 = pneg %p110
        %p198 = pneg %p107
        %s199 = sand.u32 %s97, 1
        %s200 = scalar_lea.sflag [#allocation4], %s199
        %s201 = sand.u32 %s97, 1
        %s202 = smul.addr %s201, 16
        %s203 = scalar_lea.vmem [#allocation7], %s202
        %v205 = vld [vmem:[%s177] sm:$0xff]
        %v206 = vld [vmem:[%s177 + $0x8] sm:$0xff]
        %v207 = vld [vmem:[#allocation5] sm:$0xf]
        %v208 = vld [vmem:[#allocation5 + $0x4] sm:$0xf]
        %v209 = vld [vmem:[#allocation5 + $0x8] sm:$0xf]
        %v210 = vld [vmem:[#allocation5 + $0xc] sm:$0xf]
        %v211 = vld [vmem:[#allocation5 + $0x10] sm:$0xf]
        %v212 = vld [vmem:[#allocation5 + $0x14] sm:$0xf]
        %v213 = vld [vmem:[#allocation5 + $0x18] sm:$0xf]
        %v214 = vld [vmem:[#allocation5 + $0x1c] sm:$0xf]
        %v215 = vld [vmem:[#allocation5 + $0x20] sm:$0xf]
        %v216 = vld [vmem:[#allocation5 + $0x24] sm:$0xf]
        %v217 = vld [vmem:[#allocation5 + $0x28] sm:$0xf]
        %v218 = vld [vmem:[#allocation5 + $0x2c] sm:$0xf]
        %v219 = vld [vmem:[#allocation5 + $0x30] sm:$0xf]
        %v220 = vld [vmem:[#allocation5 + $0x34] sm:$0xf]
        %v221 = vld [vmem:[#allocation5 + $0x38] sm:$0xf]
        %v222 = vld [vmem:[#allocation5 + $0x3c] sm:$0xf]
        %v223 = vld [vmem:[#allocation5 + $0x40] sm:$0xf]
        %v224 = vld [vmem:[#allocation5 + $0x44] sm:$0xf]
        %v225 = vld [vmem:[#allocation5 + $0x48] sm:$0xf]
        %v226 = vld [vmem:[#allocation5 + $0x4c] sm:$0xf]
        %v227 = vld [vmem:[#allocation5 + $0x50] sm:$0xf]
        %v228 = vld [vmem:[#allocation5 + $0x54] sm:$0xf]
        %v229 = vld [vmem:[#allocation5 + $0x58] sm:$0xf]
        %v230 = vld [vmem:[#allocation5 + $0x5c] sm:$0xf]
        %v231 = vld [vmem:[%s2] sm:$0x1]
        %v233 = vlaneseq
        %v234 = vshrl.u32 %v233, 7
        %v235 = vsub.s32 0, %v234
        %v236 = vrot.slane %v231, %v235
        %v240 = vunpack.c.l.b16 %v205
        %v241 = vunpack.c.h.b16 %v205
        %v242 = vunpack.c.l.b16 %v206
        %v243 = vunpack.c.h.b16 %v206
        %v244 = vpack.c.b16 %v242, %v240
        %v245 = vpack.c.b16 %v243, %v241
        %v271 = vunpack.c.l.b16 %v207
        %v272 = vunpack.c.l.b16 %v208
        %v273 = vunpack.c.l.b16 %v209
        %v274 = vunpack.c.l.b16 %v210
        %v275 = vunpack.c.l.b16 %v211
        %v276 = vunpack.c.l.b16 %v212
        %v277 = vunpack.c.l.b16 %v213
        %v278 = vunpack.c.l.b16 %v214
        %v279 = vunpack.c.l.b16 %v215
        %v280 = vunpack.c.l.b16 %v216
        %v281 = vunpack.c.l.b16 %v217
        %v282 = vunpack.c.l.b16 %v218
        %v283 = vunpack.c.l.b16 %v219
        %v284 = vunpack.c.l.b16 %v220
        %v285 = vunpack.c.l.b16 %v221
        %v286 = vunpack.c.l.b16 %v222
        %v287 = vunpack.c.l.b16 %v223
        %v288 = vunpack.c.l.b16 %v224
        %v289 = vunpack.c.l.b16 %v225
        %v290 = vunpack.c.l.b16 %v226
        %v291 = vunpack.c.l.b16 %v227
        %v292 = vunpack.c.l.b16 %v228
        %v293 = vunpack.c.l.b16 %v229
        %v294 = vunpack.c.l.b16 %v230
        %v295 = vpack.c.b16 %v272, %v271
        %v296 = vpack.c.b16 %v274, %v273
        %v297 = vpack.c.b16 %v276, %v275
        %v298 = vpack.c.b16 %v278, %v277
        %v299 = vpack.c.b16 %v280, %v279
        %v300 = vpack.c.b16 %v282, %v281
        %v301 = vpack.c.b16 %v284, %v283
        %v302 = vpack.c.b16 %v286, %v285
        %v303 = vpack.c.b16 %v288, %v287
        %v304 = vpack.c.b16 %v290, %v289
        %v305 = vpack.c.b16 %v292, %v291
        %v306 = vpack.c.b16 %v294, %v293
        %vm319 = vcmask 523264
        %v321 = vsel %vm319, %v245, 0
        %323 = vmatprep.subr.bf16.mxu0 0
        %324 = vmatpush1.bf16.msra.mxu0 %v295
        %325 = vmatprep.subr.bf16.mxu0 0
        %326 = vmatpush1.bf16.msra.mxu0 %v296
        %327 = vmatprep.subr.bf16.mxu0 0
        %328 = vmatpush1.bf16.msra.mxu0 %v297
        %329 = vmatprep.subr.bf16.mxu0 0
        %330 = vmatpush1.bf16.msra.mxu0 %v298
        %331 = vmatprep.subr.bf16.mxu0 0
        %332 = vmatpush1.bf16.msra.mxu0 %v299
        %333 = vmatprep.subr.bf16.mxu0 0
        %334 = vmatpush1.bf16.msra.mxu0 %v300
        %335 = vmatprep.subr.bf16.mxu0 0
        %336 = vmatpush1.bf16.msra.mxu0 %v301
        %337 = vmatprep.subr.bf16.mxu0 0
        %338 = vmatpush1.bf16.msra.mxu0 %v302
        %339 = vmatprep.subr.bf16.mxu0 0
        %340 = vmatpush1.bf16.msra.mxu0 %v303
        %341 = vmatprep.subr.bf16.mxu0 0
        %342 = vmatpush1.bf16.msra.mxu0 %v304
        %343 = vmatprep.subr.bf16.mxu0 0
        %344 = vmatpush1.bf16.msra.mxu0 %v305
        %345 = vmatprep.subr.bf16.mxu0 0
        %346 = vmatpush1.bf16.msra.mxu0 %v306
        %347 = vmatprep.subr.bf16.mxu0 0
        %348 = vmatpush1.bf16.msra.mxu0 0
        %349 = vmatprep.subr.bf16.mxu0 0
        %350 = vmatpush1.bf16.msra.mxu0 0
        %351 = vmatprep.subr.bf16.mxu0 0
        %352 = vmatpush1.bf16.msra.mxu0 0
        %353 = vmatprep.subr.bf16.mxu0 0
        %354 = vmatpush1.bf16.msra.mxu0 0
        %355 = vmatprep.mubr.bf16.mxu0 %v321
        %356 = vmatmul.mubr.bf16.gmra.mrb[0].mxu0 %v244
        %v357 = vpop.f32.mrb[0].mxu0
        %v358 = vadd.f32 %v236, %v357
        %v359 = vpop.f32.mrb[0].mxu0
        %v360 = vpop.f32.mrb[0].mxu0
        %v361 = vadd.f32 %v236, %v360
        %v362 = vpop.f32.mrb[0].mxu0
        %363 = vdwg.mxu0
        %v364 = vmax.f32 %v358, 0.0
        %v365 = vmax.f32 %v361, 0.0
        %366 = vst [vmem:[%s203] sm:$0xff] %v364
        %367 = vst [vmem:[%s203 + $0x8] sm:$0xff] %v365
        %s368 = sand.u32 %s97, 1
        %s369 = scalar_lea.sflag [#allocation4], %s368
        %s370 = sand.u32 %s97, 1
        %s371 = smul.addr %s370, 16
        %s372 = scalar_lea.vmem [#allocation7], %s371
        // Predicated region
        $region41: #{tpu_custom_call.1} parent=31 // pred_check
          %p373 = pneg %p107
        $region42: #{tpu_custom_call.1} parent=31 // pred_check_branch
          %375 = sbr.rel (%p373) target = $region44
        $region43: #{tpu_custom_call.1} parent=31 // pred_region
          %s377 = ssub.s32 256, 256
          %378 = vsyncadd %s369, %s377
          %s379 = smul.addr %s21, 2
          %s380 = smul.addr %s379, 128
          %s381 = scalar_lea.hbm %s3, %s380
          %s382 = sshll.u32 %s372, 4
          %s383 = int_to_ptr.vmem [resolvable:$true] %s382
          %388 = dma.vmem_to_hbm [thread:$0]  %s383, 256, %s381, %s369, 128, 128, 8
        $region44: #{tpu_custom_call.1} parent=31 // pred_fallthru
          _
      $region32: #{tpu_custom_call.1} parent=5 // pred_fallthru
        _
      %p389 = scmp.le.s32.totalorder 2, %s16
      // Predicated region
      $region45: #{tpu_custom_call.1} parent=5 // pred_check
        %p390 = pneg %p389
      $region46: #{tpu_custom_call.1} parent=5 // pred_check_branch
        %392 = sbr.rel (%p390) target = $region48
      $region47: #{tpu_custom_call.1} parent=5 // pred_region
        %s393 = ssub.s32 %s16, 2
        // Predicated region
        $region49: #{tpu_custom_call.1} parent=47 // pred_check
          %p394 = pneg %p113
        $region50: #{tpu_custom_call.1} parent=47 // pred_check_branch
          %396 = sbr.rel (%p394) target = $region52
        $region51: #{tpu_custom_call.1} parent=47 // pred_region
          %s397 = sand.u32 %s98, 1
          %s398 = scalar_lea.sflag [#allocation4], %s397
          %s399 = sand.u32 %s98, 1
          %s400 = smul.addr %s399, 16
          %s401 = scalar_lea.vmem [#allocation7], %s400
          %402 = dma.done %s398, 256
        $region52: #{tpu_custom_call.1} parent=47 // pred_fallthru
          _
      $region48: #{tpu_custom_call.1} parent=5 // pred_fallthru
        _
    $region6: #{tpu_custom_call.1} parent=1 // loop_footer
      %s20 = sadd.s32 1, %s16
    $region7: #{tpu_custom_call.1} parent=1 // loop_footer_branch
      %15 = sbr.rel target = $region3
    $region8: #{tpu_custom_call.1} parent=1 // loop_exit
      _
    %403 = vsyncpa [#allocation3], 1
    %s404 = scalar_lea.sflag [#allocation3], 1
    %405 = vsyncpa %s404, 1
    %406 = vsyncpa [#allocation6], 1
    %407 = vsyncpa [#allocation4], 1
    %s408 = scalar_lea.sflag [#allocation4], 1
    %409 = vsyncpa %s408, 1

</llo_original>
